<compile_context>
chip_gen: v7x
topology: tpu7x:2x2x1
jax: 0.10.0
libtpu: 0.0.40
codegen_flags: <defaults>
</compile_context>

<pallas_src>
import functools

import jax
import jax.numpy as jnp
from jax import lax
from jax.experimental import pallas as pl
from jax.experimental.pallas import tpu as pltpu


# ----------------------------------------------------------------------------
# Fused Pallas kernel: gather -> packed conv -> max-pool -> ReLU -> projection
# ----------------------------------------------------------------------------
def _cnn_fused_kernel(ids_ref, table_ref, wconv_ref, bconv_ref,
                      wproj_ref, bproj_ref, out_ref, *, max_win, t_out, nwords):
    """One kernel for the whole forward pass.

    ids_ref:   (B, Tp, 1) int32   word ids padded with `nwords` (OOV sentinel)
    table_ref: (nwords, E)        embedding table
    wconv_ref: (max_win*E, nbr*F) packed conv weights (tap-major rows, branch-major cols)
    bconv_ref: (1, nbr*F)         packed conv biases
    wproj_ref: (nbr*F, ntags)     projection weights
    bproj_ref: (1, ntags)         projection bias
    out_ref:   (B, ntags)         logits
    """
    B, t_pad, _ = ids_ref.shape
    # --- embedding gather as a one-hot matmul (keeps everything in VMEM) ----
    ids = ids_ref[...]                                                # (B, Tp, 1)
    vocab = lax.broadcasted_iota(jnp.int32, (B, t_pad, nwords), 2)
    onehot = (ids == vocab).astype(jnp.float32)                       # pad id -> all-zero row
    x_pad = jnp.einsum('btv,ve->bte', onehot, table_ref[...],
                       preferred_element_type=jnp.float32)            # (B, Tp, E)

    # --- unfold taps onto the lane axis: one matmul for ALL branches --------
    # u[b, s, j*E+e] = x_pad[b, s+j, e]
    u = jnp.concatenate([x_pad[:, j:j + t_out, :] for j in range(max_win)],
                        axis=-1)                                       # (B, t_out, max_win*E)
    y = jnp.einsum('btk,kf->btf', u, wconv_ref[...],
                   preferred_element_type=jnp.float32)                 # (B, t_out, nbr*F)

    # --- max over time, bias after pooling, ReLU ----------------------------
    # Bias is constant over time, and every branch's valid range includes a
    # fully-padded position whose pre-bias value is exactly 0 (padding=win in
    # the PyTorch conv), so pooling over the shared/extended time range and
    # adding bias afterwards is exact.
    pooled = jnp.max(y, axis=1)                                        # (B, nbr*F)
    h = jnp.maximum(pooled + bconv_ref[...], 0.0)                      # ReLU

    # --- projection ----------------------------------------------------------
    logits = (jnp.dot(h, wproj_ref[...], preferred_element_type=jnp.float32)
              + bproj_ref[...])
    out_ref[...] = logits.astype(out_ref.dtype)
    # TODO(synk): nn.Dropout after the projection is identity in eval mode;
    # training-mode dropout (mask + 1/(1-p) scaling) not implemented here.


# ----------------------------------------------------------------------------
# Parameter packing + wrapper
# ----------------------------------------------------------------------------
def _pack_conv(conv_ws, conv_bs, window_sizes, max_win, emb_size):
    """Pack per-branch (win, E, F) weights into one (max_win*E, nbr*F) block."""
    blocks, biases = [], []
    for w, b, win in zip(conv_ws, conv_bs, window_sizes):
        f = w.shape[-1]
        wp = jnp.zeros((max_win, emb_size, f), w.dtype).at[:win].set(w)
        blocks.append(wp.reshape(max_win * emb_size, f))
        biases.append(b)
    return jnp.concatenate(blocks, axis=1), jnp.concatenate(biases)[None, :]


def cnn_forward(params, words, window_sizes):
    """words: (B, T) int32 token ids -> logits (B, ntags)."""
    nwords, emb_size = params['embedding'].shape
    B, T = words.shape
    max_win = max(window_sizes)
    t_pad = T + 2 * max_win
    t_out = T + max_win + 1
    num_filters = params['conv_w'][0].shape[-1]
    nbr_f = len(window_sizes) * num_filters
    ntags = params['proj_w'].shape[-1]

    w_conv, b_conv = _pack_conv(params['conv_w'], params['conv_b'],
                                window_sizes, max_win, emb_size)
    # Pad the token ids ONCE with an out-of-vocab sentinel (=> zero embedding
    # row in the kernel); shape (B, Tp, 1) keeps ids lane-broadcastable.
    ids_pad = jnp.pad(words.astype(jnp.int32), ((0, 0), (max_win, max_win)),
                      constant_values=nwords)[:, :, None]

    kernel = functools.partial(_cnn_fused_kernel, max_win=max_win,
                               t_out=t_out, nwords=nwords)
    cost = pl.CostEstimate(
        flops=(2 * B * t_pad * nwords * emb_size
               + 2 * B * t_out * (max_win * emb_size) * nbr_f
               + 2 * B * nbr_f * ntags),
        transcendentals=0,
        bytes_accessed=4 * (ids_pad.size + params['embedding'].size
                            + w_conv.size + b_conv.size
                            + params['proj_w'].size + params['proj_b'].size
                            + B * ntags))

    # NOTE: at these sizes everything fits VMEM many times over, so a single
    # grid step with full-array blocks is the right call. If B / T scale up,
    # tile over batch (grid=(B//tb,), dimension_semantics=("parallel",)) so
    # v7x's 2 TensorCores / 64 MiB VMEM are respected.
    return pl.pallas_call(
        kernel,
        out_shape=jax.ShapeDtypeStruct((B, ntags), jnp.float32),
        grid=(1,),
        in_specs=[
            pl.BlockSpec((B, t_pad, 1), lambda i: (0, 0, 0)),
            pl.BlockSpec((nwords, emb_size), lambda i: (0, 0)),
            pl.BlockSpec((max_win * emb_size, nbr_f), lambda i: (0, 0)),
            pl.BlockSpec((1, nbr_f), lambda i: (0, 0)),
            pl.BlockSpec((nbr_f, ntags), lambda i: (0, 0)),
            pl.BlockSpec((1, ntags), lambda i: (0, 0)),
        ],
        out_specs=pl.BlockSpec((B, ntags), lambda i: (0, 0)),
        compiler_params=pltpu.CompilerParams(
            dimension_semantics=("arbitrary",),
            vmem_limit_bytes=32 * 1024 * 1024),
        cost_estimate=cost,
    )(ids_pad, params['embedding'], w_conv, b_conv,
      params['proj_w'], params['proj_b'][None, :])


# ----------------------------------------------------------------------------
# Model parameters (pretrain=False, dual_channel=False)
# ----------------------------------------------------------------------------
def init_params(key, *, nwords, emb_size, num_filters, window_sizes, ntags):
    keys = jax.random.split(key, 2 * len(window_sizes) + 3)
    params = {}
    params['embedding'] = jax.random.uniform(
        keys[0], (nwords, emb_size), jnp.float32, -0.25, 0.25)
    params['conv_w'] = []
    params['conv_b'] = []
    for i, win in enumerate(window_sizes):
        fan_in = emb_size * win
        bound = 1.0 / jnp.sqrt(fan_in)
        params['conv_w'].append(jax.random.uniform(
            keys[1 + 2 * i], (win, emb_size, num_filters), jnp.float32,
            -bound, bound))
        params['conv_b'].append(jax.random.uniform(
            keys[2 + 2 * i], (num_filters,), jnp.float32, -bound, bound))
    in_size = len(window_sizes) * num_filters
    xav = jnp.sqrt(6.0 / (in_size + ntags))
    params['proj_w'] = jax.random.uniform(
        keys[-2], (in_size, ntags), jnp.float32, -xav, xav)
    params['proj_b'] = jax.random.uniform(
        keys[-1], (ntags,), jnp.float32, -1.0 / jnp.sqrt(in_size),
        1.0 / jnp.sqrt(in_size))
    return params


# Pure-JAX reference (XLA conv) for correctness check.
def ref_forward(params, words, window_sizes):
    emb = params['embedding'][words]
    hall = []
    for i, win in enumerate(window_sizes):
        h = lax.conv_general_dilated(
            emb, params['conv_w'][i],
            window_strides=(1,), padding=[(win, win)],
            dimension_numbers=('NWC', 'WIO', 'NWC'))
        h = h + params['conv_b'][i][None, None, :]
        h = jnp.maximum(jnp.max(h, axis=1), 0.0)
        hall.append(h)
    h = jnp.concatenate(hall, axis=1)
    return h @ params['proj_w'] + params['proj_b'][None, :]


# ----------------------------------------------------------------------------
if __name__ == "__main__":
    key = jax.random.PRNGKey(0)
    nwords, emb_size, num_filters, ntags = 100, 32, 16, 5
    window_sizes = (3, 4, 5)
    B, T = 2, 8

    pkey, wkey = jax.random.split(key)
    params = init_params(pkey, nwords=nwords, emb_size=emb_size,
                         num_filters=num_filters, window_sizes=window_sizes,
                         ntags=ntags)
    words = jax.random.randint(wkey, (B, T), 0, nwords, dtype=jnp.int32)

    out = cnn_forward(params, words, window_sizes)
    out = jax.block_until_ready(out)

    ref = jax.block_until_ready(ref_forward(params, words, window_sizes))
    assert out.shape == (B, ntags)
    assert jnp.allclose(out, ref, atol=1e-4, rtol=1e-4), (out, ref)

    print("KERNEL_OK")
</pallas_src>

<mosaic_0001>
module attributes {stable_mosaic.version = 11 : i64} {
  func.func @_cnn_fused_kernel(%arg0: i32, %arg1: memref<2x18x1xi32, #tpu.memory_space<vmem>>, %arg2: memref<100x32xf32, #tpu.memory_space<vmem>>, %arg3: memref<160x48xf32, #tpu.memory_space<vmem>>, %arg4: memref<1x48xf32, #tpu.memory_space<vmem>>, %arg5: memref<48x5xf32, #tpu.memory_space<vmem>>, %arg6: memref<1x5xf32, #tpu.memory_space<vmem>>, %arg7: memref<2x5xf32, #tpu.memory_space<vmem>>) attributes {dimension_semantics = [#tpu.dimension_semantics<arbitrary>], iteration_bounds = array<i64: 1>, scalar_prefetch = 0 : i64, scratch_operands = 0 : i64, tpu.core_type = #tpu.core_type<tc>, window_params = [{pipeline_mode = #tpu.pipeline_mode<synchronous>, transform_indices = @transform_0, window_bounds = array<i64: 2, 18, 1>}, {pipeline_mode = #tpu.pipeline_mode<synchronous>, transform_indices = @transform_1, window_bounds = array<i64: 100, 32>}, {pipeline_mode = #tpu.pipeline_mode<synchronous>, transform_indices = @transform_2, window_bounds = array<i64: 160, 48>}, {pipeline_mode = #tpu.pipeline_mode<synchronous>, transform_indices = @transform_3, window_bounds = array<i64: 1, 48>}, {pipeline_mode = #tpu.pipeline_mode<synchronous>, transform_indices = @transform_4, window_bounds = array<i64: 48, 5>}, {pipeline_mode = #tpu.pipeline_mode<synchronous>, transform_indices = @transform_5, window_bounds = array<i64: 1, 5>}, {pipeline_mode = #tpu.pipeline_mode<synchronous>, transform_indices = @transform_6, window_bounds = array<i64: 2, 5>}]} {
    %c0 = arith.constant 0 : index
    %c0_0 = arith.constant 0 : index
    %c0_1 = arith.constant 0 : index
    %0 = vector.load %arg1[%c0, %c0_0, %c0_1] : memref<2x18x1xi32, #tpu.memory_space<vmem>>, vector<2x18x1xi32>
    %1 = tpu.iota {dimensions = array<i32: 2>} : vector<2x18x100xi32>
    %2 = vector.broadcast %0 : vector<2x18x1xi32> to vector<2x18x100xi32>
    %3 = arith.cmpi eq, %2, %1 : vector<2x18x100xi32>
    %4 = arith.extui %3 : vector<2x18x100xi1> to vector<2x18x100xi32>
    %5 = arith.sitofp %4 : vector<2x18x100xi32> to vector<2x18x100xf32>
    %c0_2 = arith.constant 0 : index
    %c0_3 = arith.constant 0 : index
    %6 = vector.load %arg2[%c0_2, %c0_3] : memref<100x32xf32, #tpu.memory_space<vmem>>, vector<100x32xf32>
    "tpu.trace_start"() <{level = 10 : i32, message = "btv,ve->bte"}> : () -> ()
    %cst = arith.constant dense<0.000000e+00> : vector<2x18x32xf32>
    %7 = tpu.matmul %5, %6, %cst {dimension_numbers = #tpu.dot_dimension_numbers<[2], [0], [0, 1], [1], [0, 0, 0, 1, 1, 1], [], []>} : vector<2x18x100xf32>, vector<100x32xf32>, vector<2x18x32xf32> -> vector<2x18x32xf32>
    "tpu.trace_stop"() : () -> ()
    %8 = vector.extract_strided_slice %7 {offsets = [0, 0, 0], sizes = [2, 14, 32], strides = [1, 1, 1]} : vector<2x18x32xf32> to vector<2x14x32xf32>
    %9 = vector.extract_strided_slice %7 {offsets = [0, 1, 0], sizes = [2, 14, 32], strides = [1, 1, 1]} : vector<2x18x32xf32> to vector<2x14x32xf32>
    %10 = vector.extract_strided_slice %7 {offsets = [0, 2, 0], sizes = [2, 14, 32], strides = [1, 1, 1]} : vector<2x18x32xf32> to vector<2x14x32xf32>
    %11 = vector.extract_strided_slice %7 {offsets = [0, 3, 0], sizes = [2, 14, 32], strides = [1, 1, 1]} : vector<2x18x32xf32> to vector<2x14x32xf32>
    %12 = vector.extract_strided_slice %7 {offsets = [0, 4, 0], sizes = [2, 14, 32], strides = [1, 1, 1]} : vector<2x18x32xf32> to vector<2x14x32xf32>
    %13 = tpu.concatenate %8, %9, %10, %11, %12 in 2 : vector<2x14x32xf32>, vector<2x14x32xf32>, vector<2x14x32xf32>, vector<2x14x32xf32>, vector<2x14x32xf32> -> vector<2x14x160xf32>
    %c0_4 = arith.constant 0 : index
    %c0_5 = arith.constant 0 : index
    %14 = vector.load %arg3[%c0_4, %c0_5] : memref<160x48xf32, #tpu.memory_space<vmem>>, vector<160x48xf32>
    "tpu.trace_start"() <{level = 10 : i32, message = "btk,kf->btf"}> : () -> ()
    %cst_6 = arith.constant dense<0.000000e+00> : vector<2x14x48xf32>
    %15 = tpu.matmul %13, %14, %cst_6 {dimension_numbers = #tpu.dot_dimension_numbers<[2], [0], [0, 1], [1], [0, 0, 0, 1, 1, 1], [], []>} : vector<2x14x160xf32>, vector<160x48xf32>, vector<2x14x48xf32> -> vector<2x14x48xf32>
    "tpu.trace_stop"() : () -> ()
    %cst_7 = arith.constant dense<0xFF800000> : vector<2x48xf32>
    %16 = vector.multi_reduction <maximumf>, %15, %cst_7 [1] : vector<2x14x48xf32> to vector<2x48xf32>
    %c0_8 = arith.constant 0 : index
    %c0_9 = arith.constant 0 : index
    %17 = vector.load %arg4[%c0_8, %c0_9] : memref<1x48xf32, #tpu.memory_space<vmem>>, vector<1x48xf32>
    %18 = vector.broadcast %17 : vector<1x48xf32> to vector<2x48xf32>
    %19 = arith.addf %16, %18 : vector<2x48xf32>
    %cst_10 = arith.constant 0.000000e+00 : f32
    %20 = vector.broadcast %cst_10 : f32 to vector<2x48xf32>
    %21 = arith.maximumf %19, %20 : vector<2x48xf32>
    %c0_11 = arith.constant 0 : index
    %c0_12 = arith.constant 0 : index
    %22 = vector.load %arg5[%c0_11, %c0_12] : memref<48x5xf32, #tpu.memory_space<vmem>>, vector<48x5xf32>
    %cst_13 = arith.constant dense<0.000000e+00> : vector<2x5xf32>
    %23 = tpu.matmul %21, %22, %cst_13 {dimension_numbers = #tpu.dot_dimension_numbers<[1], [0], [0], [1], [0, 0, 1, 1], [], []>} : vector<2x48xf32>, vector<48x5xf32>, vector<2x5xf32> -> vector<2x5xf32>
    %c0_14 = arith.constant 0 : index
    %c0_15 = arith.constant 0 : index
    %24 = vector.load %arg6[%c0_14, %c0_15] : memref<1x5xf32, #tpu.memory_space<vmem>>, vector<1x5xf32>
    %25 = vector.broadcast %24 : vector<1x5xf32> to vector<2x5xf32>
    %26 = arith.addf %23, %25 : vector<2x5xf32>
    %c0_16 = arith.constant 0 : index
    %c0_17 = arith.constant 0 : index
    %27 = vector.load %arg7[%c0_16, %c0_17] : memref<2x5xf32, #tpu.memory_space<vmem>>, vector<2x5xf32>
    tpu.vector_store %arg7[%c0_16, %c0_17], %26 {strides = array<i32>} : memref<2x5xf32, #tpu.memory_space<vmem>>, vector<2x5xf32>,
    return
  }
  func.func @transform_0(%arg0: i32) -> (i32, i32, i32) {
    %c0_i32 = arith.constant 0 : i32
    %c0_i32_0 = arith.constant 0 : i32
    %c0_i32_1 = arith.constant 0 : i32
    %c0_i32_2 = arith.constant 0 : i32
    return %c0_i32, %c0_i32_0, %c0_i32_1 : i32, i32, i32
  }
  func.func @transform_1(%arg0: i32) -> (i32, i32) {
    %c0_i32 = arith.constant 0 : i32
    %c0_i32_0 = arith.constant 0 : i32
    %c0_i32_1 = arith.constant 0 : i32
    return %c0_i32, %c0_i32_0 : i32, i32
  }
  func.func @transform_2(%arg0: i32) -> (i32, i32) {
    %c0_i32 = arith.constant 0 : i32
    %c0_i32_0 = arith.constant 0 : i32
    %c0_i32_1 = arith.constant 0 : i32
    return %c0_i32, %c0_i32_0 : i32, i32
  }
  func.func @transform_3(%arg0: i32) -> (i32, i32) {
    %c0_i32 = arith.constant 0 : i32
    %c0_i32_0 = arith.constant 0 : i32
    %c0_i32_1 = arith.constant 0 : i32
    return %c0_i32, %c0_i32_0 : i32, i32
  }
  func.func @transform_4(%arg0: i32) -> (i32, i32) {
    %c0_i32 = arith.constant 0 : i32
    %c0_i32_0 = arith.constant 0 : i32
    %c0_i32_1 = arith.constant 0 : i32
    return %c0_i32, %c0_i32_0 : i32, i32
  }
  func.func @transform_5(%arg0: i32) -> (i32, i32) {
    %c0_i32 = arith.constant 0 : i32
    %c0_i32_0 = arith.constant 0 : i32
    %c0_i32_1 = arith.constant 0 : i32
    return %c0_i32, %c0_i32_0 : i32, i32
  }
  func.func @transform_6(%arg0: i32) -> (i32, i32) {
    %c0_i32 = arith.constant 0 : i32
    %c0_i32_0 = arith.constant 0 : i32
    %c0_i32_1 = arith.constant 0 : i32
    return %c0_i32, %c0_i32_0 : i32, i32
  }
}

</mosaic_0001>

<llo_original>
// kernel: tpu_custom_call.1
$region0: #{tpu_custom_call.1}
  #allocation0 [shape = 'u32[]', space=smem, size = 0x4, offset = 0x4, fixed_abs, tag = 'smem constant byte address 0x4 - core index']
  #allocation1 [shape = 'u32[144,128]{1,0:T(1,128)}', space=vmem, size = 0x12000, scoped, tag = 'internal scratch']
  %s0 = inlined_call_operand.vmem [shape: s32[2,18,1], index: 0, kind: input, shape index: {}]
  %s1 = inlined_call_operand.vmem [shape: f32[100,32], index: 1, kind: input, shape index: {}]
  %s2 = inlined_call_operand.vmem [shape: f32[160,48], index: 2, kind: input, shape index: {}]
  %s3 = inlined_call_operand.vmem [shape: f32[1,48], index: 3, kind: input, shape index: {}]
  %s4 = inlined_call_operand.vmem [shape: f32[48,5], index: 4, kind: input, shape index: {}]
  %s5 = inlined_call_operand.vmem [shape: f32[1,5], index: 5, kind: input, shape index: {}]
  %s6 = inlined_call_operand.hbm [shape: f32[2,5], index: 6, kind: output, shape index: {}]
  %s7 = sld [smem:[#allocation0]]
  $region34: #{tpu_custom_call.1} parent=0
    _
  %s9 = ssub.s32 1, %s7
  %s10 = scalar_select 0, %s9, %s7
  $region1: #{tpu_custom_call.1} parent=0
    #allocation2 [shape = 'u8[1024]{0}', space=vmem, size = 0x400, scoped, tag = 'output window, operand 0, single buffered']
    #allocation3 [shape = 's32[1]{0}', space=sflag, size = 0x4, scoped, tag = 'scoped memory for tpu_custom_call.1']
    %11 = vsyncpa [#allocation3], 0
    // Predicated region
    $region2: #{tpu_custom_call.1} parent=1 // pred_check
      _
    $region3: #{tpu_custom_call.1} parent=1 // pred_check_branch
      %13 = sbr.rel (0) target = $region5
    $region4: #{tpu_custom_call.1} parent=1 // pred_region
      _
    $region5: #{tpu_custom_call.1} parent=1 // pred_fallthru
      _
    // Predicated region
    $region6: #{tpu_custom_call.1} parent=1 // pred_check
      _
    $region7: #{tpu_custom_call.1} parent=1 // pred_check_branch
      %15 = sbr.rel (0) target = $region9
    $region8: #{tpu_custom_call.1} parent=1 // pred_region
      _
    $region9: #{tpu_custom_call.1} parent=1 // pred_fallthru
      _
    // Predicated region
    $region10: #{tpu_custom_call.1} parent=1 // pred_check
      _
    $region11: #{tpu_custom_call.1} parent=1 // pred_check_branch
      %17 = sbr.rel (0) target = $region13
    $region12: #{tpu_custom_call.1} parent=1 // pred_region
      _
    $region13: #{tpu_custom_call.1} parent=1 // pred_fallthru
      _
    // Predicated region
    $region14: #{tpu_custom_call.1} parent=1 // pred_check
      _
    $region15: #{tpu_custom_call.1} parent=1 // pred_check_branch
      %19 = sbr.rel (0) target = $region17
    $region16: #{tpu_custom_call.1} parent=1 // pred_region
      _
    $region17: #{tpu_custom_call.1} parent=1 // pred_fallthru
      _
    // Predicated region
    $region18: #{tpu_custom_call.1} parent=1 // pred_check
      _
    $region19: #{tpu_custom_call.1} parent=1 // pred_check_branch
      %21 = sbr.rel (0) target = $region21
    $region20: #{tpu_custom_call.1} parent=1 // pred_region
      _
    $region21: #{tpu_custom_call.1} parent=1 // pred_fallthru
      _
    // Predicated region
    $region22: #{tpu_custom_call.1} parent=1 // pred_check
      _
    $region23: #{tpu_custom_call.1} parent=1 // pred_check_branch
      %23 = sbr.rel (0) target = $region25
    $region24: #{tpu_custom_call.1} parent=1 // pred_region
      _
    $region25: #{tpu_custom_call.1} parent=1 // pred_fallthru
      _
    %v24 = vld [vmem:[%s0] sm:$0xff]
    %v25 = vld [vmem:[%s0 + $0x8] sm:$0xff]
    %v26 = vld [vmem:[%s0 + $0x10] sm:$0x3]
    %v27 = vld [vmem:[%s0 + $0x18] sm:$0xff]
    %v28 = vld [vmem:[%s0 + $0x20] sm:$0xff]
    %v29 = vld [vmem:[%s0 + $0x28] sm:$0x3]
    %v30 = vlaneseq
    %v31 = vand.u32 %v30, 127
    %32 = vset.pattern.permute.xlu0 0
    %33 = vperm.xlu0 %32, %v24
    %v34 = vpop.permute.xlu0 %33
    %35 = vset.pattern.permute.xlu0 0
    %36 = vperm.xlu0 %35, %v25
    %v37 = vpop.permute.xlu0 %36
    %38 = vset.pattern.permute.xlu0 0
    %39 = vperm.xlu0 %38, %v26
    %v40 = vpop.permute.xlu0 %39
    %41 = vset.pattern.permute.xlu0 0
    %42 = vperm.xlu0 %41, %v27
    %v43 = vpop.permute.xlu0 %42
    %44 = vset.pattern.permute.xlu0 0
    %45 = vperm.xlu0 %44, %v28
    %v46 = vpop.permute.xlu0 %45
    %47 = vset.pattern.permute.xlu0 0
    %48 = vperm.xlu0 %47, %v29
    %v49 = vpop.permute.xlu0 %48
    %vm50 = vcmp.eq.s32.totalorder %v34, %v31
    %vm51 = vcmp.eq.s32.totalorder %v37, %v31
    %vm52 = vcmp.eq.s32.totalorder %v40, %v31
    %vm53 = vcmp.eq.s32.totalorder %v43, %v31
    %vm54 = vcmp.eq.s32.totalorder %v46, %v31
    %vm55 = vcmp.eq.s32.totalorder %v49, %v31
    %v56 = vsel %vm50, 1, 0
    %v57 = vsel %vm51, 1, 0
    %v58 = vsel %vm52, 1, 0
    %v59 = vsel %vm53, 1, 0
    %v60 = vsel %vm54, 1, 0
    %v61 = vsel %vm55, 1, 0
    %v62 = vcvt.s32.f32 %v56
    %v63 = vcvt.s32.f32 %v57
    %v64 = vcvt.s32.f32 %v58
    %v65 = vcvt.s32.f32 %v59
    %v66 = vcvt.s32.f32 %v60
    %v67 = vcvt.s32.f32 %v61
    %v68 = vld [vmem:[%s1] sm:$0xff]
    %v69 = vld [vmem:[%s1 + $0x8] sm:$0xff]
    %v70 = vld [vmem:[%s1 + $0x10] sm:$0xff]
    %v71 = vld [vmem:[%s1 + $0x18] sm:$0xff]
    %v72 = vld [vmem:[%s1 + $0x20] sm:$0xff]
    %v73 = vld [vmem:[%s1 + $0x28] sm:$0xff]
    %v74 = vld [vmem:[%s1 + $0x30] sm:$0xff]
    %v75 = vld [vmem:[%s1 + $0x38] sm:$0xff]
    %v76 = vld [vmem:[%s1 + $0x40] sm:$0xff]
    %v77 = vld [vmem:[%s1 + $0x48] sm:$0xff]
    %v78 = vld [vmem:[%s1 + $0x50] sm:$0xff]
    %v79 = vld [vmem:[%s1 + $0x58] sm:$0xff]
    %v80 = vld [vmem:[%s1 + $0x60] sm:$0xf]
    %v87 = vcombine.high %v62, %v62
    %v89 = vunpack.c.l.s4 1983009808
    %v90 = vunpack.c.0.s8 %v89
    %v91 = vlaneseq
    %v92 = vshrl.u32 %v91, 7
    %v93 = vsub.s32 %v90, %v92
    %v94 = vrot.slane %v62, %v93
    %v96 = vunpack.c.l.s4 1983009808
    %v97 = vunpack.c.0.s8 %v96
    %v98 = vlaneseq
    %v99 = vshrl.u32 %v98, 7
    %v100 = vsub.s32 %v97, %v99
    %v101 = vrot.slane %v87, %v100
    %v102 = vcombine.high %v94, %v94
    %v103 = vcombine.high %v101, %v101
    %v104 = vcombine.high %v63, %v63
    %v106 = vunpack.c.l.s4 1983009808
    %v107 = vunpack.c.0.s8 %v106
    %v108 = vlaneseq
    %v109 = vshrl.u32 %v108, 7
    %v110 = vsub.s32 %v107, %v109
    %v111 = vrot.slane %v63, %v110
    %v113 = vunpack.c.l.s4 1983009808
    %v114 = vunpack.c.0.s8 %v113
    %v115 = vlaneseq
    %v116 = vshrl.u32 %v115, 7
    %v117 = vsub.s32 %v114, %v116
    %v118 = vrot.slane %v104, %v117
    %v119 = vcombine.high %v111, %v111
    %v120 = vcombine.high %v118, %v118
    %v122 = vunpack.c.l.s4 1983009808
    %v123 = vunpack.c.0.s8 %v122
    %v124 = vlaneseq
    %v125 = vshrl.u32 %v124, 7
    %v126 = vsub.s32 %v123, %v125
    %v127 = vrot.slane %v64, %v126
    %v128 = vcombine.high %v65, %v65
    %v130 = vunpack.c.l.s4 1983009808
    %v131 = vunpack.c.0.s8 %v130
    %v132 = vlaneseq
    %v133 = vshrl.u32 %v132, 7
    %v134 = vsub.s32 %v131, %v133
    %v135 = vrot.slane %v65, %v134
    %v137 = vunpack.c.l.s4 1983009808
    %v138 = vunpack.c.0.s8 %v137
    %v139 = vlaneseq
    %v140 = vshrl.u32 %v139, 7
    %v141 = vsub.s32 %v138, %v140
    %v142 = vrot.slane %v128, %v141
    %v143 = vcombine.high %v135, %v135
    %v144 = vcombine.high %v142, %v142
    %v145 = vcombine.high %v66, %v66
    %v147 = vunpack.c.l.s4 1983009808
    %v148 = vunpack.c.0.s8 %v147
    %v149 = vlaneseq
    %v150 = vshrl.u32 %v149, 7
    %v151 = vsub.s32 %v148, %v150
    %v152 = vrot.slane %v66, %v151
    %v154 = vunpack.c.l.s4 1983009808
    %v155 = vunpack.c.0.s8 %v154
    %v156 = vlaneseq
    %v157 = vshrl.u32 %v156, 7
    %v158 = vsub.s32 %v155, %v157
    %v159 = vrot.slane %v145, %v158
    %v160 = vcombine.high %v152, %v152
    %v161 = vcombine.high %v159, %v159
    %v163 = vunpack.c.l.s4 1983009808
    %v164 = vunpack.c.0.s8 %v163
    %v165 = vlaneseq
    %v166 = vshrl.u32 %v165, 7
    %v167 = vsub.s32 %v164, %v166
    %v168 = vrot.slane %v67, %v167
    %v169 = vcombine.low %v94, %v102
    %v170 = vcombine.low %v101, %v103
    %v172 = vunpack.c.l.s4 1983009808
    %v173 = vunpack.c.0.s8 %v172
    %v174 = vlaneseq
    %v175 = vshrl.u32 %v174, 7
    %v176 = vsub.s32 %v173, %v175
    %v177 = vrot.slane %v169, %v176
    %v179 = vunpack.c.l.s4 1983009808
    %v180 = vunpack.c.0.s8 %v179
    %v181 = vlaneseq
    %v182 = vshrl.u32 %v181, 7
    %v183 = vsub.s32 %v180, %v182
    %v184 = vrot.slane %v170, %v183
    %v185 = vcombine.low %v177, %v184
    %v186 = vcombine.low %v111, %v119
    %v187 = vcombine.low %v118, %v120
    %v189 = vunpack.c.l.s4 1983009808
    %v190 = vunpack.c.0.s8 %v189
    %v191 = vlaneseq
    %v192 = vshrl.u32 %v191, 7
    %v193 = vsub.s32 %v190, %v192
    %v194 = vrot.slane %v186, %v193
    %v196 = vunpack.c.l.s4 1983009808
    %v197 = vunpack.c.0.s8 %v196
    %v198 = vlaneseq
    %v199 = vshrl.u32 %v198, 7
    %v200 = vsub.s32 %v197, %v199
    %v201 = vrot.slane %v187, %v200
    %v202 = vcombine.low %v194, %v201
    %v203 = vcombine.low %v127, %v135
    %v204 = vcombine.low %v143, %v142
    %v206 = vunpack.c.l.s4 1983009808
    %v207 = vunpack.c.0.s8 %v206
    %v208 = vlaneseq
    %v209 = vshrl.u32 %v208, 7
    %v210 = vsub.s32 %v207, %v209
    %v211 = vrot.slane %v203, %v210
    %v213 = vunpack.c.l.s4 1983009808
    %v214 = vunpack.c.0.s8 %v213
    %v215 = vlaneseq
    %v216 = vshrl.u32 %v215, 7
    %v217 = vsub.s32 %v214, %v216
    %v218 = vrot.slane %v204, %v217
    %v219 = vcombine.low %v211, %v218
    %v220 = vcombine.low %v144, %v152
    %v221 = vcombine.low %v160, %v159
    %v223 = vunpack.c.l.s4 1983009808
    %v224 = vunpack.c.0.s8 %v223
    %v225 = vlaneseq
    %v226 = vshrl.u32 %v225, 7
    %v227 = vsub.s32 %v224, %v226
    %v228 = vrot.slane %v220, %v227
    %v230 = vunpack.c.l.s4 1983009808
    %v231 = vunpack.c.0.s8 %v230
    %v232 = vlaneseq
    %v233 = vshrl.u32 %v232, 7
    %v234 = vsub.s32 %v231, %v233
    %v235 = vrot.slane %v221, %v234
    %v236 = vcombine.low %v228, %v235
    %v237 = vcombine.low %v161, %v168
    %v239 = vunpack.c.l.s4 1983009808
    %v240 = vunpack.c.0.s8 %v239
    %v241 = vlaneseq
    %v242 = vshrl.u32 %v241, 7
    %v243 = vsub.s32 %v240, %v242
    %v244 = vrot.slane %v237, %v243
    %vm245 = vcmask 818176
    %v246 = vsel %vm245, %v185, 0
    %v248 = vsel %vm245, %v202, 0
    %v250 = vsel %vm245, %v219, 0
    %v252 = vsel %vm245, %v236, 0
    %v254 = vsel %vm245, %v244, 0
    %vm256 = vcmask 1043456
    %v258 = vsel %vm256, %v80, 0
    %260 = vmatprep.subr.mxu0 0.0
    %261 = vmatpush1.msra.mxu0 %v68
    %262 = vmatprep.subr.mxu0 0.0
    %263 = vmatpush1.msra.mxu0 %v69
    %264 = vmatprep.subr.mxu0 0.0
    %265 = vmatpush1.msra.mxu0 %v70
    %266 = vmatprep.subr.mxu0 0.0
    %267 = vmatpush1.msra.mxu0 %v71
    %268 = vmatprep.subr.mxu0 0.0
    %269 = vmatpush1.msra.mxu0 %v72
    %270 = vmatprep.subr.mxu0 0.0
    %271 = vmatpush1.msra.mxu0 %v73
    %272 = vmatprep.subr.mxu0 0.0
    %273 = vmatpush1.msra.mxu0 %v74
    %274 = vmatprep.subr.mxu0 0.0
    %275 = vmatpush1.msra.mxu0 %v75
    %276 = vmatprep.subr.mxu0 0.0
    %277 = vmatpush1.msra.mxu0 %v76
    %278 = vmatprep.subr.mxu0 0.0
    %279 = vmatpush1.msra.mxu0 %v77
    %280 = vmatprep.subr.mxu0 0.0
    %281 = vmatpush1.msra.mxu0 %v78
    %282 = vmatprep.subr.mxu0 0.0
    %283 = vmatpush1.msra.mxu0 %v79
    %284 = vmatprep.subr.mxu0 0.0
    %285 = vmatpush1.msra.mxu0 %v258
    %286 = vmatprep.subr.mxu0 0.0
    %287 = vmatpush1.msra.mxu0 0.0
    %288 = vmatprep.subr.mxu0 0.0
    %289 = vmatpush1.msra.mxu0 0.0
    %290 = vmatprep.subr.mxu0 0.0
    %291 = vmatpush1.msra.mxu0 0.0
    %292 = vmatprep.subr.mxu0 0.0
    %293 = vmatpush1.msra.mxu0 0.0
    %294 = vmatprep.subr.mxu0 0.0
    %295 = vmatpush1.msra.mxu0 0.0
    %296 = vmatprep.subr.mxu0 0.0
    %297 = vmatpush1.msra.mxu0 0.0
    %298 = vmatprep.subr.mxu0 0.0
    %299 = vmatpush1.msra.mxu0 0.0
    %300 = vmatprep.subr.mxu0 0.0
    %301 = vmatpush1.msra.mxu0 0.0
    %302 = vmatprep.subr.mxu0 0.0
    %303 = vmatpush1.msra.mxu0 0.0
    %304 = vmatprep.subr.mxu0 0.0
    %305 = vmatpush1.msra.mxu0 0.0
    %306 = vmatprep.subr.mxu0 0.0
    %307 = vmatpush1.msra.mxu0 0.0
    %308 = vmatprep.subr.mxu0 0.0
    %309 = vmatpush1.msra.mxu0 0.0
    %310 = vmatprep.subr.mxu0 0.0
    %311 = vmatpush1.msra.mxu0 0.0
    %312 = vmatprep.subr.mxu0 0.0
    %313 = vmatpush1.msra.mxu0 0.0
    %314 = vmatprep.subr.mxu0 0.0
    %315 = vmatpush1.msra.mxu0 0.0
    %316 = vmatprep.subr.mxu0 0.0
    %317 = vmatpush1.msra.mxu0 0.0
    %318 = vmatprep.subr.mxu0 0.0
    %319 = vmatpush1.msra.mxu0 0.0
    %320 = vmatprep.subr.mxu0 0.0
    %321 = vmatpush1.msra.mxu0 0.0
    %322 = vmatprep.subr.mxu0 0.0
    %323 = vmatpush1.msra.mxu0 0.0
    %324 = vmatprep.mubr.f32.mxu0 0.0
    %325 = vmatmul.mubr.f32.gmra.mrb[0].mxu0 %v246
    %v326 = vpop.f32.mrb[0].mxu0
    %v327 = vadd.f32 0.0, %v326
    %v328 = vpop.f32.mrb[0].mxu0
    %329 = vmatprep.mubr.f32.mxu0 0.0
    %330 = vmatmul.mubr.f32.gmra.mrb[0].mxu0 %v248
    %v331 = vpop.f32.mrb[0].mxu0
    %v332 = vadd.f32 0.0, %v331
    %v333 = vpop.f32.mrb[0].mxu0
    %334 = vmatprep.mubr.f32.mxu0 0.0
    %335 = vmatmul.mubr.f32.gmra.mrb[0].mxu0 %v250
    %v336 = vpop.f32.mrb[0].mxu0
    %v337 = vadd.f32 0.0, %v336
    %v338 = vpop.f32.mrb[0].mxu0
    %339 = vmatprep.mubr.f32.mxu0 0.0
    %340 = vmatmul.mubr.f32.gmra.mrb[0].mxu0 %v252
    %v341 = vpop.f32.mrb[0].mxu0
    %v342 = vadd.f32 0.0, %v341
    %v343 = vpop.f32.mrb[0].mxu0
    %344 = vmatprep.mubr.f32.mxu0 0.0
    %345 = vmatmul.mubr.f32.gmra.mrb[0].mxu0 %v254
    %v346 = vpop.f32.mrb[0].mxu0
    %v347 = vadd.f32 0.0, %v346
    %v348 = vpop.f32.mrb[0].mxu0
    %349 = vdwg.mxu0
    %v355 = vcombine.high %v327, %v327
    %v357 = vunpack.c.l.s4 1983009808
    %v358 = vunpack.c.0.s8 %v357
    %v359 = vlaneseq
    %v360 = vshrl.u32 %v359, 7
    %v361 = vsub.s32 %v358, %v360
    %v362 = vrot.slane %v327, %v361
    %v364 = vunpack.c.l.s4 1983009808
    %v365 = vunpack.c.0.s8 %v364
    %v366 = vlaneseq
    %v367 = vshrl.u32 %v366, 7
    %v368 = vsub.s32 %v365, %v367
    %v369 = vrot.slane %v355, %v368
    %v370 = vcombine.high %v362, %v362
    %v371 = vcombine.high %v369, %v369
    %v372 = vcombine.high %v332, %v332
    %v374 = vunpack.c.l.s4 1983009808
    %v375 = vunpack.c.0.s8 %v374
    %v376 = vlaneseq
    %v377 = vshrl.u32 %v376, 7
    %v378 = vsub.s32 %v375, %v377
    %v379 = vrot.slane %v332, %v378
    %v381 = vunpack.c.l.s4 1983009808
    %v382 = vunpack.c.0.s8 %v381
    %v383 = vlaneseq
    %v384 = vshrl.u32 %v383, 7
    %v385 = vsub.s32 %v382, %v384
    %v386 = vrot.slane %v372, %v385
    %v387 = vcombine.high %v379, %v379
    %v388 = vcombine.high %v386, %v386
    %v389 = vcombine.high %v337, %v337
    %v391 = vunpack.c.l.s4 1983009808
    %v392 = vunpack.c.0.s8 %v391
    %v393 = vlaneseq
    %v394 = vshrl.u32 %v393, 7
    %v395 = vsub.s32 %v392, %v394
    %v396 = vrot.slane %v337, %v395
    %v398 = vunpack.c.l.s4 1983009808
    %v399 = vunpack.c.0.s8 %v398
    %v400 = vlaneseq
    %v401 = vshrl.u32 %v400, 7
    %v402 = vsub.s32 %v399, %v401
    %v403 = vrot.slane %v389, %v402
    %v404 = vcombine.high %v396, %v396
    %v405 = vcombine.high %v403, %v403
    %v406 = vcombine.high %v342, %v342
    %v408 = vunpack.c.l.s4 1983009808
    %v409 = vunpack.c.0.s8 %v408
    %v410 = vlaneseq
    %v411 = vshrl.u32 %v410, 7
    %v412 = vsub.s32 %v409, %v411
    %v413 = vrot.slane %v342, %v412
    %v415 = vunpack.c.l.s4 1983009808
    %v416 = vunpack.c.0.s8 %v415
    %v417 = vlaneseq
    %v418 = vshrl.u32 %v417, 7
    %v419 = vsub.s32 %v416, %v418
    %v420 = vrot.slane %v406, %v419
    %v421 = vcombine.high %v413, %v413
    %v422 = vcombine.high %v420, %v420
    %v424 = vunpack.c.l.s4 1983009808
    %v425 = vunpack.c.0.s8 %v424
    %v426 = vlaneseq
    %v427 = vshrl.u32 %v426, 7
    %v428 = vsub.s32 %v425, %v427
    %v429 = vrot.slane %v347, %v428
    %v430 = vcombine.high %v429, %v429
    %v431 = vcombine.low %v362, %v370
    %v432 = vcombine.low %v369, %v371
    %v434 = vunpack.c.l.s4 1983009808
    %v435 = vunpack.c.0.s8 %v434
    %v436 = vlaneseq
    %v437 = vshrl.u32 %v436, 7
    %v438 = vsub.s32 %v435, %v437
    %v439 = vrot.slane %v431, %v438
    %v441 = vunpack.c.l.s4 1983009808
    %v442 = vunpack.c.0.s8 %v441
    %v443 = vlaneseq
    %v444 = vshrl.u32 %v443, 7
    %v445 = vsub.s32 %v442, %v444
    %v446 = vrot.slane %v432, %v445
    %v447 = vcombine.low %v439, %v446
    %v448 = vcombine.low %v379, %v387
    %v450 = vunpack.c.l.s4 1983009808
    %v451 = vunpack.c.0.s8 %v450
    %v452 = vlaneseq
    %v453 = vshrl.u32 %v452, 7
    %v454 = vsub.s32 %v451, %v453
    %v455 = vrot.slane %v448, %v454
    %v457 = vunpack.c.l.s4 1983009808
    %v458 = vunpack.c.0.s8 %v457
    %v459 = vlaneseq
    %v460 = vshrl.u32 %v459, 7
    %v461 = vsub.s32 %v458, %v460
    %v462 = vrot.slane %v386, %v461
    %v463 = vcombine.low %v455, %v462
    %v464 = vcombine.low %v404, %v403
    %v465 = vcombine.low %v405, %v413
    %v467 = vunpack.c.l.s4 1983009808
    %v468 = vunpack.c.0.s8 %v467
    %v469 = vlaneseq
    %v470 = vshrl.u32 %v469, 7
    %v471 = vsub.s32 %v468, %v470
    %v472 = vrot.slane %v464, %v471
    %v474 = vunpack.c.l.s4 1983009808
    %v475 = vunpack.c.0.s8 %v474
    %v476 = vlaneseq
    %v477 = vshrl.u32 %v476, 7
    %v478 = vsub.s32 %v475, %v477
    %v479 = vrot.slane %v465, %v478
    %v480 = vcombine.low %v472, %v479
    %v481 = vcombine.low %v421, %v420
    %v483 = vunpack.c.l.s4 1983009808
    %v484 = vunpack.c.0.s8 %v483
    %v485 = vlaneseq
    %v486 = vshrl.u32 %v485, 7
    %v487 = vsub.s32 %v484, %v486
    %v488 = vrot.slane %v481, %v487
    %v490 = vunpack.c.l.s4 1983009808
    %v491 = vunpack.c.0.s8 %v490
    %v492 = vlaneseq
    %v493 = vshrl.u32 %v492, 7
    %v494 = vsub.s32 %v491, %v493
    %v495 = vrot.slane %v422, %v494
    %v496 = vcombine.low %v488, %v495
    %v501 = vcombine.low %v386, %v388
    %v503 = vunpack.c.l.s4 1983009808
    %v504 = vunpack.c.0.s8 %v503
    %v505 = vlaneseq
    %v506 = vshrl.u32 %v505, 7
    %v507 = vsub.s32 %v504, %v506
    %v508 = vrot.slane %v501, %v507
    %v509 = vcombine.low %v455, %v508
    %v510 = vcombine.low %v422, %v429
    %v512 = vunpack.c.l.s4 1983009808
    %v513 = vunpack.c.0.s8 %v512
    %v514 = vlaneseq
    %v515 = vshrl.u32 %v514, 7
    %v516 = vsub.s32 %v513, %v515
    %v517 = vrot.slane %v510, %v516
    %v518 = vcombine.low %v488, %v517
    %vm519 = vcmask 1046528
    %v520 = vrot.slane %v447, 1
    %v521 = vrot.slane %v509, 1
    %v522 = vsel %vm519, %v520, %v521
    %v523 = vrot.slane %v480, 1
    %v524 = vrot.slane %v518, 1
    %v525 = vsel %vm519, %v523, %v524
    %526 = vrot.lane.b32.xlu0 %v522, 32
    %v527 = vpop.permute.xlu0 %526
    %528 = vrot.lane.b32.xlu0 %v521, 32
    %v529 = vpop.permute.xlu0 %528
    %530 = vrot.lane.b32.xlu0 %v525, 32
    %v531 = vpop.permute.xlu0 %530
    %532 = vrot.lane.b32.xlu0 %v524, 32
    %v533 = vpop.permute.xlu0 %532
    %v538 = vcombine.low %v370, %v369
    %v539 = vcombine.low %v371, %v379
    %v541 = vunpack.c.l.s4 1983009808
    %v542 = vunpack.c.0.s8 %v541
    %v543 = vlaneseq
    %v544 = vshrl.u32 %v543, 7
    %v545 = vsub.s32 %v542, %v544
    %v546 = vrot.slane %v538, %v545
    %v548 = vunpack.c.l.s4 1983009808
    %v549 = vunpack.c.0.s8 %v548
    %v550 = vlaneseq
    %v551 = vshrl.u32 %v550, 7
    %v552 = vsub.s32 %v549, %v551
    %v553 = vrot.slane %v539, %v552
    %v554 = vcombine.low %v546, %v553
    %v555 = vcombine.low %v387, %v386
    %v557 = vunpack.c.l.s4 1983009808
    %v558 = vunpack.c.0.s8 %v557
    %v559 = vlaneseq
    %v560 = vshrl.u32 %v559, 7
    %v561 = vsub.s32 %v558, %v560
    %v562 = vrot.slane %v555, %v561
    %v564 = vunpack.c.l.s4 1983009808
    %v565 = vunpack.c.0.s8 %v564
    %v566 = vlaneseq
    %v567 = vshrl.u32 %v566, 7
    %v568 = vsub.s32 %v565, %v567
    %v569 = vrot.slane %v388, %v568
    %v570 = vcombine.low %v562, %v569
    %v571 = vcombine.low %v403, %v405
    %v572 = vcombine.low %v413, %v421
    %v574 = vunpack.c.l.s4 1983009808
    %v575 = vunpack.c.0.s8 %v574
    %v576 = vlaneseq
    %v577 = vshrl.u32 %v576, 7
    %v578 = vsub.s32 %v575, %v577
    %v579 = vrot.slane %v571, %v578
    %v581 = vunpack.c.l.s4 1983009808
    %v582 = vunpack.c.0.s8 %v581
    %v583 = vlaneseq
    %v584 = vshrl.u32 %v583, 7
    %v585 = vsub.s32 %v582, %v584
    %v586 = vrot.slane %v572, %v585
    %v587 = vcombine.low %v579, %v586
    %v588 = vcombine.low %v420, %v422
    %v590 = vunpack.c.l.s4 1983009808
    %v591 = vunpack.c.0.s8 %v590
    %v592 = vlaneseq
    %v593 = vshrl.u32 %v592, 7
    %v594 = vsub.s32 %v591, %v593
    %v595 = vrot.slane %v588, %v594
    %v597 = vunpack.c.l.s4 1983009808
    %v598 = vunpack.c.0.s8 %v597
    %v599 = vlaneseq
    %v600 = vshrl.u32 %v599, 7
    %v601 = vsub.s32 %v598, %v600
    %v602 = vrot.slane %v429, %v601
    %v603 = vcombine.low %v595, %v602
    %604 = vrot.lane.b32.xlu0 %v554, 64
    %v605 = vpop.permute.xlu0 %604
    %606 = vrot.lane.b32.xlu0 %v570, 64
    %v607 = vpop.permute.xlu0 %606
    %608 = vrot.lane.b32.xlu0 %v587, 64
    %v609 = vpop.permute.xlu0 %608
    %610 = vrot.lane.b32.xlu0 %v603, 64
    %v611 = vpop.permute.xlu0 %610
    %v616 = vcombine.low %v388, %v396
    %v618 = vunpack.c.l.s4 1983009808
    %v619 = vunpack.c.0.s8 %v618
    %v620 = vlaneseq
    %v621 = vshrl.u32 %v620, 7
    %v622 = vsub.s32 %v619, %v621
    %v623 = vrot.slane %v616, %v622
    %v624 = vcombine.low %v562, %v623
    %v625 = vcombine.low %v429, %v430
    %v627 = vunpack.c.l.s4 1983009808
    %v628 = vunpack.c.0.s8 %v627
    %v629 = vlaneseq
    %v630 = vshrl.u32 %v629, 7
    %v631 = vsub.s32 %v628, %v630
    %v632 = vrot.slane %v625, %v631
    %v633 = vcombine.low %v595, %v632
    %v634 = vrot.slane %v554, 1
    %v635 = vrot.slane %v624, 1
    %v636 = vsel %vm519, %v634, %v635
    %v637 = vrot.slane %v587, 1
    %v638 = vrot.slane %v633, 1
    %v639 = vsel %vm519, %v637, %v638
    %640 = vrot.lane.b32.xlu0 %v636, 96
    %v641 = vpop.permute.xlu0 %640
    %642 = vrot.lane.b32.xlu0 %v635, 96
    %v643 = vpop.permute.xlu0 %642
    %644 = vrot.lane.b32.xlu0 %v639, 96
    %v645 = vpop.permute.xlu0 %644
    %646 = vrot.lane.b32.xlu0 %v638, 96
    %v647 = vpop.permute.xlu0 %646
    %v652 = vcombine.low %v446, %v455
    %v654 = vunpack.c.l.s4 1983009808
    %v655 = vunpack.c.0.s8 %v654
    %v656 = vlaneseq
    %v657 = vshrl.u32 %v656, 7
    %v658 = vsub.s32 %v655, %v657
    %v659 = vrot.slane %v396, %v658
    %v660 = vcombine.low %v508, %v659
    %v661 = vcombine.low %v479, %v488
    %v663 = vunpack.c.l.s4 1983009808
    %v664 = vunpack.c.0.s8 %v663
    %v665 = vlaneseq
    %v666 = vshrl.u32 %v665, 7
    %v667 = vsub.s32 %v664, %v666
    %v668 = vrot.slane %v430, %v667
    %v669 = vcombine.low %v517, %v668
    %vm670 = vcmask 261120
    %v671 = vsel %vm670, %v447, %v527
    %v672 = vsel %vm670, %v463, %v529
    %v673 = vsel %vm670, %v480, %v531
    %v674 = vsel %vm670, %v496, %v533
    %vm675 = vcmask 523264
    %v676 = vsel %vm675, %v671, %v605
    %v677 = vsel %vm675, %v672, %v607
    %v678 = vsel %vm675, %v673, %v609
    %v679 = vsel %vm675, %v674, %v611
    %vm680 = vcmask 785408
    %v681 = vsel %vm680, %v676, %v641
    %v682 = vsel %vm680, %v677, %v643
    %v683 = vsel %vm680, %v678, %v645
    %v684 = vsel %vm680, %v679, %v647
    %v685 = vld [vmem:[%s2] sm:$0xff]
    %v686 = vld [vmem:[%s2 + $0x8] sm:$0xff]
    %v687 = vld [vmem:[%s2 + $0x10] sm:$0xff]
    %v688 = vld [vmem:[%s2 + $0x18] sm:$0xff]
    %v689 = vld [vmem:[%s2 + $0x20] sm:$0xff]
    %v690 = vld [vmem:[%s2 + $0x28] sm:$0xff]
    %v691 = vld [vmem:[%s2 + $0x30] sm:$0xff]
    %v692 = vld [vmem:[%s2 + $0x38] sm:$0xff]
    %v693 = vld [vmem:[%s2 + $0x40] sm:$0xff]
    %v694 = vld [vmem:[%s2 + $0x48] sm:$0xff]
    %v695 = vld [vmem:[%s2 + $0x50] sm:$0xff]
    %v696 = vld [vmem:[%s2 + $0x58] sm:$0xff]
    %v697 = vld [vmem:[%s2 + $0x60] sm:$0xff]
    %v698 = vld [vmem:[%s2 + $0x68] sm:$0xff]
    %v699 = vld [vmem:[%s2 + $0x70] sm:$0xff]
    %v700 = vld [vmem:[%s2 + $0x78] sm:$0xff]
    %v701 = vld [vmem:[%s2 + $0x80] sm:$0xff]
    %v702 = vld [vmem:[%s2 + $0x88] sm:$0xff]
    %v703 = vld [vmem:[%s2 + $0x90] sm:$0xff]
    %v704 = vld [vmem:[%s2 + $0x98] sm:$0xff]
    %v709 = vcombine.low %v681, %v652
    %v710 = vcombine.high %v681, %v652
    %v712 = vunpack.c.l.s4 1983009808
    %v713 = vunpack.c.0.s8 %v712
    %v714 = vlaneseq
    %v715 = vshrl.u32 %v714, 7
    %v716 = vsub.s32 %v713, %v715
    %v717 = vrot.slane %v709, %v716
    %v719 = vunpack.c.l.s4 1983009808
    %v720 = vunpack.c.0.s8 %v719
    %v721 = vlaneseq
    %v722 = vshrl.u32 %v721, 7
    %v723 = vsub.s32 %v720, %v722
    %v724 = vrot.slane %v710, %v723
    %v725 = vcombine.high %v717, %v717
    %v726 = vcombine.high %v724, %v724
    %v727 = vcombine.low %v682, %v660
    %v728 = vcombine.high %v682, %v660
    %v730 = vunpack.c.l.s4 1983009808
    %v731 = vunpack.c.0.s8 %v730
    %v732 = vlaneseq
    %v733 = vshrl.u32 %v732, 7
    %v734 = vsub.s32 %v731, %v733
    %v735 = vrot.slane %v727, %v734
    %v737 = vunpack.c.l.s4 1983009808
    %v738 = vunpack.c.0.s8 %v737
    %v739 = vlaneseq
    %v740 = vshrl.u32 %v739, 7
    %v741 = vsub.s32 %v738, %v740
    %v742 = vrot.slane %v728, %v741
    %v743 = vcombine.high %v735, %v735
    %v744 = vcombine.low %v683, %v661
    %v745 = vcombine.high %v683, %v661
    %v747 = vunpack.c.l.s4 1983009808
    %v748 = vunpack.c.0.s8 %v747
    %v749 = vlaneseq
    %v750 = vshrl.u32 %v749, 7
    %v751 = vsub.s32 %v748, %v750
    %v752 = vrot.slane %v744, %v751
    %v754 = vunpack.c.l.s4 1983009808
    %v755 = vunpack.c.0.s8 %v754
    %v756 = vlaneseq
    %v757 = vshrl.u32 %v756, 7
    %v758 = vsub.s32 %v755, %v757
    %v759 = vrot.slane %v745, %v758
    %v760 = vcombine.high %v752, %v752
    %v761 = vcombine.high %v759, %v759
    %v762 = vcombine.low %v684, %v669
    %v763 = vcombine.high %v684, %v669
    %v765 = vunpack.c.l.s4 1983009808
    %v766 = vunpack.c.0.s8 %v765
    %v767 = vlaneseq
    %v768 = vshrl.u32 %v767, 7
    %v769 = vsub.s32 %v766, %v768
    %v770 = vrot.slane %v762, %v769
    %v772 = vunpack.c.l.s4 1983009808
    %v773 = vunpack.c.0.s8 %v772
    %v774 = vlaneseq
    %v775 = vshrl.u32 %v774, 7
    %v776 = vsub.s32 %v773, %v775
    %v777 = vrot.slane %v763, %v776
    %v778 = vcombine.high %v770, %v770
    %v779 = vcombine.low %v717, %v725
    %v780 = vcombine.low %v724, %v726
    %v782 = vunpack.c.l.s4 1983009808
    %v783 = vunpack.c.0.s8 %v782
    %v784 = vlaneseq
    %v785 = vshrl.u32 %v784, 7
    %v786 = vsub.s32 %v783, %v785
    %v787 = vrot.slane %v779, %v786
    %v789 = vunpack.c.l.s4 1983009808
    %v790 = vunpack.c.0.s8 %v789
    %v791 = vlaneseq
    %v792 = vshrl.u32 %v791, 7
    %v793 = vsub.s32 %v790, %v792
    %v794 = vrot.slane %v780, %v793
    %v795 = vcombine.low %v787, %v794
    %v796 = vcombine.high %v787, %v794
    %v797 = vcombine.low %v735, %v743
    %v798 = vcombine.low %v742, %v752
    %v800 = vunpack.c.l.s4 1983009808
    %v801 = vunpack.c.0.s8 %v800
    %v802 = vlaneseq
    %v803 = vshrl.u32 %v802, 7
    %v804 = vsub.s32 %v801, %v803
    %v805 = vrot.slane %v797, %v804
    %v807 = vunpack.c.l.s4 1983009808
    %v808 = vunpack.c.0.s8 %v807
    %v809 = vlaneseq
    %v810 = vshrl.u32 %v809, 7
    %v811 = vsub.s32 %v808, %v810
    %v812 = vrot.slane %v798, %v811
    %v813 = vcombine.low %v805, %v812
    %v814 = vcombine.high %v805, %v812
    %v815 = vcombine.low %v760, %v759
    %v816 = vcombine.low %v761, %v770
    %v818 = vunpack.c.l.s4 1983009808
    %v819 = vunpack.c.0.s8 %v818
    %v820 = vlaneseq
    %v821 = vshrl.u32 %v820, 7
    %v822 = vsub.s32 %v819, %v821
    %v823 = vrot.slane %v815, %v822
    %v825 = vunpack.c.l.s4 1983009808
    %v826 = vunpack.c.0.s8 %v825
    %v827 = vlaneseq
    %v828 = vshrl.u32 %v827, 7
    %v829 = vsub.s32 %v826, %v828
    %v830 = vrot.slane %v816, %v829
    %v831 = vcombine.low %v823, %v830
    %v832 = vcombine.high %v823, %v830
    %v833 = vcombine.low %v778, %v777
    %v835 = vunpack.c.l.s4 1983009808
    %v836 = vunpack.c.0.s8 %v835
    %v837 = vlaneseq
    %v838 = vshrl.u32 %v837, 7
    %v839 = vsub.s32 %v836, %v838
    %v840 = vrot.slane %v833, %v839
    %v841 = vcombine.high %v840, %v840
    %v846 = vsel %vm670, %v796, 0
    %v848 = vsel %vm670, %v814, 0
    %v850 = vsel %vm670, %v832, 0
    %v852 = vsel %vm670, %v841, 0
    %854 = vmatprep.subr.mxu0 0.0
    %855 = vmatpush1.msra.mxu0 %v685
    %856 = vmatprep.subr.mxu0 0.0
    %857 = vmatpush1.msra.mxu0 %v686
    %858 = vmatprep.subr.mxu0 0.0
    %859 = vmatpush1.msra.mxu0 %v687
    %860 = vmatprep.subr.mxu0 0.0
    %861 = vmatpush1.msra.mxu0 %v688
    %862 = vmatprep.subr.mxu0 0.0
    %863 = vmatpush1.msra.mxu0 %v689
    %864 = vmatprep.subr.mxu0 0.0
    %865 = vmatpush1.msra.mxu0 %v690
    %866 = vmatprep.subr.mxu0 0.0
    %867 = vmatpush1.msra.mxu0 %v691
    %868 = vmatprep.subr.mxu0 0.0
    %869 = vmatpush1.msra.mxu0 %v692
    %870 = vmatprep.subr.mxu0 0.0
    %871 = vmatpush1.msra.mxu0 %v693
    %872 = vmatprep.subr.mxu0 0.0
    %873 = vmatpush1.msra.mxu0 %v694
    %874 = vmatprep.subr.mxu0 0.0
    %875 = vmatpush1.msra.mxu0 %v695
    %876 = vmatprep.subr.mxu0 0.0
    %877 = vmatpush1.msra.mxu0 %v696
    %878 = vmatprep.subr.mxu0 0.0
    %879 = vmatpush1.msra.mxu0 %v697
    %880 = vmatprep.subr.mxu0 0.0
    %881 = vmatpush1.msra.mxu0 %v698
    %882 = vmatprep.subr.mxu0 0.0
    %883 = vmatpush1.msra.mxu0 %v699
    %884 = vmatprep.subr.mxu0 0.0
    %885 = vmatpush1.msra.mxu0 %v700
    %886 = vmatprep.subr.mxu0 0.0
    %887 = vmatpush1.msra.mxu0 %v701
    %888 = vmatprep.subr.mxu0 0.0
    %889 = vmatpush1.msra.mxu0 %v702
    %890 = vmatprep.subr.mxu0 0.0
    %891 = vmatpush1.msra.mxu0 %v703
    %892 = vmatprep.subr.mxu0 0.0
    %893 = vmatpush1.msra.mxu0 %v704
    %894 = vmatprep.subr.mxu0 0.0
    %895 = vmatpush1.msra.mxu0 0.0
    %896 = vmatprep.subr.mxu0 0.0
    %897 = vmatpush1.msra.mxu0 0.0
    %898 = vmatprep.subr.mxu0 0.0
    %899 = vmatpush1.msra.mxu0 0.0
    %900 = vmatprep.subr.mxu0 0.0
    %901 = vmatpush1.msra.mxu0 0.0
    %902 = vmatprep.subr.mxu0 0.0
    %903 = vmatpush1.msra.mxu0 0.0
    %904 = vmatprep.subr.mxu0 0.0
    %905 = vmatpush1.msra.mxu0 0.0
    %906 = vmatprep.subr.mxu0 0.0
    %907 = vmatpush1.msra.mxu0 0.0
    %908 = vmatprep.subr.mxu0 0.0
    %909 = vmatpush1.msra.mxu0 0.0
    %910 = vmatprep.subr.mxu0 0.0
    %911 = vmatpush1.msra.mxu0 0.0
    %912 = vmatprep.subr.mxu0 0.0
    %913 = vmatpush1.msra.mxu0 0.0
    %914 = vmatprep.subr.mxu0 0.0
    %915 = vmatpush1.msra.mxu0 0.0
    %916 = vmatprep.subr.mxu0 0.0
    %917 = vmatpush1.msra.mxu0 0.0
    %918 = vmatprep.mubr.f32.mxu0 %v846
    %919 = vmatmul.mubr.f32.gmra.mrb[0].mxu0 %v795
    %v920 = vpop.f32.mrb[0].mxu0
    %v921 = vadd.f32 0.0, %v920
    %v922 = vpop.f32.mrb[0].mxu0
    %923 = vmatprep.mubr.f32.mxu0 %v848
    %924 = vmatmul.mubr.f32.gmra.mrb[0].mxu0 %v813
    %v925 = vpop.f32.mrb[0].mxu0
    %v926 = vadd.f32 0.0, %v925
    %v927 = vpop.f32.mrb[0].mxu0
    %928 = vmatprep.mubr.f32.mxu0 %v850
    %929 = vmatmul.mubr.f32.gmra.mrb[0].mxu0 %v831
    %v930 = vpop.f32.mrb[0].mxu0
    %v931 = vadd.f32 0.0, %v930
    %v932 = vpop.f32.mrb[0].mxu0
    %933 = vmatprep.mubr.f32.mxu0 %v852
    %934 = vmatmul.mubr.f32.gmra.mrb[0].mxu0 %v840
    %v935 = vpop.f32.mrb[0].mxu0
    %v936 = vadd.f32 0.0, %v935
    %v937 = vpop.f32.mrb[0].mxu0
    %938 = vdwg.mxu0
    %v943 = vcombine.high %v921, %v921
    %v945 = vunpack.c.l.s4 1983009808
    %v946 = vunpack.c.0.s8 %v945
    %v947 = vlaneseq
    %v948 = vshrl.u32 %v947, 7
    %v949 = vsub.s32 %v946, %v948
    %v950 = vrot.slane %v921, %v949
    %v952 = vunpack.c.l.s4 1983009808
    %v953 = vunpack.c.0.s8 %v952
    %v954 = vlaneseq
    %v955 = vshrl.u32 %v954, 7
    %v956 = vsub.s32 %v953, %v955
    %v957 = vrot.slane %v943, %v956
    %v958 = vcombine.high %v950, %v950
    %v959 = vcombine.high %v957, %v957
    %v960 = vcombine.high %v926, %v926
    %v962 = vunpack.c.l.s4 1983009808
    %v963 = vunpack.c.0.s8 %v962
    %v964 = vlaneseq
    %v965 = vshrl.u32 %v964, 7
    %v966 = vsub.s32 %v963, %v965
    %v967 = vrot.slane %v926, %v966
    %v969 = vunpack.c.l.s4 1983009808
    %v970 = vunpack.c.0.s8 %v969
    %v971 = vlaneseq
    %v972 = vshrl.u32 %v971, 7
    %v973 = vsub.s32 %v970, %v972
    %v974 = vrot.slane %v960, %v973
    %v975 = vcombine.high %v967, %v967
    %v976 = vcombine.high %v974, %v974
    %v977 = vcombine.high %v931, %v931
    %v979 = vunpack.c.l.s4 1983009808
    %v980 = vunpack.c.0.s8 %v979
    %v981 = vlaneseq
    %v982 = vshrl.u32 %v981, 7
    %v983 = vsub.s32 %v980, %v982
    %v984 = vrot.slane %v931, %v983
    %v986 = vunpack.c.l.s4 1983009808
    %v987 = vunpack.c.0.s8 %v986
    %v988 = vlaneseq
    %v989 = vshrl.u32 %v988, 7
    %v990 = vsub.s32 %v987, %v989
    %v991 = vrot.slane %v977, %v990
    %v992 = vcombine.high %v984, %v984
    %v993 = vcombine.high %v991, %v991
    %v995 = vunpack.c.l.s4 1983009808
    %v996 = vunpack.c.0.s8 %v995
    %v997 = vlaneseq
    %v998 = vshrl.u32 %v997, 7
    %v999 = vsub.s32 %v996, %v998
    %v1000 = vrot.slane %v936, %v999
    %v1001 = vcombine.high %v1000, %v1000
    %v1002 = vcombine.low %v950, %v958
    %v1003 = vcombine.low %v957, %v959
    %v1005 = vunpack.c.l.s4 1983009808
    %v1006 = vunpack.c.0.s8 %v1005
    %v1007 = vlaneseq
    %v1008 = vshrl.u32 %v1007, 7
    %v1009 = vsub.s32 %v1006, %v1008
    %v1010 = vrot.slane %v1002, %v1009
    %v1012 = vunpack.c.l.s4 1983009808
    %v1013 = vunpack.c.0.s8 %v1012
    %v1014 = vlaneseq
    %v1015 = vshrl.u32 %v1014, 7
    %v1016 = vsub.s32 %v1013, %v1015
    %v1017 = vrot.slane %v1003, %v1016
    %v1018 = vcombine.low %v1010, %v1017
    %v1019 = vcombine.low %v967, %v975
    %v1021 = vunpack.c.l.s4 1983009808
    %v1022 = vunpack.c.0.s8 %v1021
    %v1023 = vlaneseq
    %v1024 = vshrl.u32 %v1023, 7
    %v1025 = vsub.s32 %v1022, %v1024
    %v1026 = vrot.slane %v1019, %v1025
    %v1028 = vunpack.c.l.s4 1983009808
    %v1029 = vunpack.c.0.s8 %v1028
    %v1030 = vlaneseq
    %v1031 = vshrl.u32 %v1030, 7
    %v1032 = vsub.s32 %v1029, %v1031
    %v1033 = vrot.slane %v974, %v1032
    %v1034 = vcombine.low %v1026, %v1033
    %v1035 = vcombine.low %v976, %v984
    %v1036 = vcombine.low %v992, %v991
    %v1038 = vunpack.c.l.s4 1983009808
    %v1039 = vunpack.c.0.s8 %v1038
    %v1040 = vlaneseq
    %v1041 = vshrl.u32 %v1040, 7
    %v1042 = vsub.s32 %v1039, %v1041
    %v1043 = vrot.slane %v1035, %v1042
    %v1045 = vunpack.c.l.s4 1983009808
    %v1046 = vunpack.c.0.s8 %v1045
    %v1047 = vlaneseq
    %v1048 = vshrl.u32 %v1047, 7
    %v1049 = vsub.s32 %v1046, %v1048
    %v1050 = vrot.slane %v1036, %v1049
    %v1051 = vcombine.low %v1043, %v1050
    %v1052 = vcombine.low %v993, %v1000
    %v1054 = vunpack.c.l.s4 1983009808
    %v1055 = vunpack.c.0.s8 %v1054
    %v1056 = vlaneseq
    %v1057 = vshrl.u32 %v1056, 7
    %v1058 = vsub.s32 %v1055, %v1057
    %v1059 = vrot.slane %v1052, %v1058
    %v1061 = vunpack.c.l.s4 1983009808
    %v1062 = vunpack.c.0.s8 %v1061
    %v1063 = vlaneseq
    %v1064 = vshrl.u32 %v1063, 7
    %v1065 = vsub.s32 %v1062, %v1064
    %v1066 = vrot.slane %v1001, %v1065
    %v1067 = vcombine.low %v1059, %v1066
    %vm1072 = vcmask 392192
    %v1073 = vsel %vm1072, %v1018, -inf
    %vm1074 = vcmask 390144
    %v1075 = vsel %vm1074, %v1034, -inf
    %v1076 = vmax.f32 %v1073, %v1075
    %v1077 = vrot.slane %v1076, 4
    %v1078 = vmax.f32 %v1076, %v1077
    %v1079 = vrot.slane %v1078, 2
    %v1080 = vmax.f32 %v1078, %v1079
    %v1081 = vrot.slane %v1080, 1
    %v1082 = vmax.f32 %v1080, %v1081
    %v1083 = vsel %vm1072, %v1051, -inf
    %v1084 = vsel %vm1074, %v1067, -inf
    %v1085 = vmax.f32 %v1083, %v1084
    %v1086 = vrot.slane %v1085, 4
    %v1087 = vmax.f32 %v1085, %v1086
    %v1088 = vrot.slane %v1087, 2
    %v1089 = vmax.f32 %v1087, %v1088
    %v1090 = vrot.slane %v1089, 1
    %v1091 = vmax.f32 %v1089, %v1090
    %v1092 = vld [vmem:[%s3] sm:$0x1]
    %v1094 = vlaneseq
    %v1095 = vshrl.u32 %v1094, 7
    %v1096 = vsub.s32 0, %v1095
    %v1097 = vrot.slane %v1092, %v1096
    %v1099 = vadd.f32 %v1082, %v1097
    %v1100 = vadd.f32 %v1091, %v1097
    %v1101 = vmax.f32 %v1099, 0.0
    %v1102 = vmax.f32 %v1100, 0.0
    %v1103 = vld [vmem:[%s4] sm:$0xff]
    %v1104 = vld [vmem:[%s4 + $0x8] sm:$0xff]
    %v1105 = vld [vmem:[%s4 + $0x10] sm:$0xff]
    %v1106 = vld [vmem:[%s4 + $0x18] sm:$0xff]
    %v1107 = vld [vmem:[%s4 + $0x20] sm:$0xff]
    %v1108 = vld [vmem:[%s4 + $0x28] sm:$0xff]
    %v1109 = vld [vmem:[%s5] sm:$0x1]
    %v1111 = vlaneseq
    %v1112 = vshrl.u32 %v1111, 7
    %v1113 = vsub.s32 0, %v1112
    %v1114 = vrot.slane %v1109, %v1113
    %v1118 = vrot.slane %v1102, 7
    %vm1119 = vcmask 1041409
    %v1120 = vsel %vm1119, %v1118, %v1101
    %v1121 = vsel %vm1072, %v1120, 0
    %1123 = vmatprep.subr.mxu0 0.0
    %1124 = vmatpush1.msra.mxu0 %v1103
    %1125 = vmatprep.subr.mxu0 0.0
    %1126 = vmatpush1.msra.mxu0 %v1104
    %1127 = vmatprep.subr.mxu0 0.0
    %1128 = vmatpush1.msra.mxu0 %v1105
    %1129 = vmatprep.subr.mxu0 0.0
    %1130 = vmatpush1.msra.mxu0 %v1106
    %1131 = vmatprep.subr.mxu0 0.0
    %1132 = vmatpush1.msra.mxu0 %v1107
    %1133 = vmatprep.subr.mxu0 0.0
    %1134 = vmatpush1.msra.mxu0 %v1108
    %1135 = vmatprep.subr.mxu0 0.0
    %1136 = vmatpush1.msra.mxu0 0.0
    %1137 = vmatprep.subr.mxu0 0.0
    %1138 = vmatpush1.msra.mxu0 0.0
    %1139 = vmatprep.subr.mxu0 0.0
    %1140 = vmatpush1.msra.mxu0 0.0
    %1141 = vmatprep.subr.mxu0 0.0
    %1142 = vmatpush1.msra.mxu0 0.0
    %1143 = vmatprep.subr.mxu0 0.0
    %1144 = vmatpush1.msra.mxu0 0.0
    %1145 = vmatprep.subr.mxu0 0.0
    %1146 = vmatpush1.msra.mxu0 0.0
    %1147 = vmatprep.subr.mxu0 0.0
    %1148 = vmatpush1.msra.mxu0 0.0
    %1149 = vmatprep.subr.mxu0 0.0
    %1150 = vmatpush1.msra.mxu0 0.0
    %1151 = vmatprep.subr.mxu0 0.0
    %1152 = vmatpush1.msra.mxu0 0.0
    %1153 = vmatprep.subr.mxu0 0.0
    %1154 = vmatpush1.msra.mxu0 0.0
    %1155 = vmatprep.subr.mxu0 0.0
    %1156 = vmatpush1.msra.mxu0 0.0
    %1157 = vmatprep.subr.mxu0 0.0
    %1158 = vmatpush1.msra.mxu0 0.0
    %1159 = vmatprep.subr.mxu0 0.0
    %1160 = vmatpush1.msra.mxu0 0.0
    %1161 = vmatprep.subr.mxu0 0.0
    %1162 = vmatpush1.msra.mxu0 0.0
    %1163 = vmatprep.subr.mxu0 0.0
    %1164 = vmatpush1.msra.mxu0 0.0
    %1165 = vmatprep.subr.mxu0 0.0
    %1166 = vmatpush1.msra.mxu0 0.0
    %1167 = vmatprep.subr.mxu0 0.0
    %1168 = vmatpush1.msra.mxu0 0.0
    %1169 = vmatprep.subr.mxu0 0.0
    %1170 = vmatpush1.msra.mxu0 0.0
    %1171 = vmatprep.subr.mxu0 0.0
    %1172 = vmatpush1.msra.mxu0 0.0
    %1173 = vmatprep.subr.mxu0 0.0
    %1174 = vmatpush1.msra.mxu0 0.0
    %1175 = vmatprep.subr.mxu0 0.0
    %1176 = vmatpush1.msra.mxu0 0.0
    %1177 = vmatprep.subr.mxu0 0.0
    %1178 = vmatpush1.msra.mxu0 0.0
    %1179 = vmatprep.subr.mxu0 0.0
    %1180 = vmatpush1.msra.mxu0 0.0
    %1181 = vmatprep.subr.mxu0 0.0
    %1182 = vmatpush1.msra.mxu0 0.0
    %1183 = vmatprep.subr.mxu0 0.0
    %1184 = vmatpush1.msra.mxu0 0.0
    %1185 = vmatprep.subr.mxu0 0.0
    %1186 = vmatpush1.msra.mxu0 0.0
    %1187 = vmatprep.mubr.f32.mxu0 0.0
    %1188 = vmatmul.mubr.f32.gmra.mrb[0].mxu0 %v1121
    %v1189 = vpop.f32.mrb[0].mxu0
    %v1190 = vadd.f32 %v1114, %v1189
    %v1191 = vpop.f32.mrb[0].mxu0
    %1192 = vdwg.mxu0
    %vm1193 = vcmask 33792
    %1194 = vst.msk [vmem:[#allocation2] sm:$0x3] %vm1193, %v1190
    // Predicated region
    $region26: #{tpu_custom_call.1} parent=1 // pred_check
      _
    $region27: #{tpu_custom_call.1} parent=1 // pred_check_branch
      %1196 = sbr.rel (0) target = $region29
    $region28: #{tpu_custom_call.1} parent=1 // pred_region
      %s1198 = ssub.s32 32, 32
      %1199 = vsyncadd [#allocation3], %s1198
      %s1201 = sshll.u32 [#allocation2], 4
      %s1202 = int_to_ptr.vmem [resolvable:$true] %s1201
      %1204 = dma.vmem_to_hbm [thread:$0]  %s1202, 32, %s6, [#allocation3]
    $region29: #{tpu_custom_call.1} parent=1 // pred_fallthru
      _
    // Predicated region
    $region30: #{tpu_custom_call.1} parent=1 // pred_check
      _
    $region31: #{tpu_custom_call.1} parent=1 // pred_check_branch
      %1206 = sbr.rel (0) target = $region33
    $region32: #{tpu_custom_call.1} parent=1 // pred_region
      %1207 = dma.done [#allocation3], 32
    $region33: #{tpu_custom_call.1} parent=1 // pred_fallthru
      _
    %1208 = vsyncpa [#allocation3], 1

</llo_original>
